<compile_context>
chip_gen: v6e
topology: v6e:2x2x1
jax: 0.10.0
libtpu: 0.0.40
codegen_flags: <defaults>
</compile_context>

<pallas_src>
import numpy as np
import jax
import jax.numpy as jnp
from jax.experimental import pallas as pl
from jax.experimental.pallas import tpu as pltpu


# ---------------------------------------------------------------------------
# Kernel
# ---------------------------------------------------------------------------
def _iresblock_fwd_kernel(coeff_ref, x_ref, sq_ref, ld_in_ref, z_ref, ld_out_ref):
    """coeff_ref:  SMEM (S,)     per-sample coefficient sums (1/S folded in).
       x_ref:      VMEM (tb, D)  input tile.
       sq_ref:     VMEM (tb, S)  per-(row, sample) probe squared norms ||v_s||^2.
       ld_in_ref:  VMEM (tb, 1)  incoming log_df_dz.
       z_ref:      VMEM (tb, D)  output z = x + g(x).
       ld_out_ref: VMEM (tb, 1)  log_df_dz + unbiased log-det estimate.
    """
    x = x_ref[...]
    # g_fn is the empty nn.Sequential() -> identity map, so g(x) = x.
    z_ref[...] = x + x

    # Collapsed unbiased power series (dg/dx == I): every VJP iterate equals
    # the probe, so  sum_k c_{s,k} <w_k, v_s> == (sum_k c_{s,k}) * ||v_s||^2.
    S = sq_ref.shape[-1]
    est = coeff_ref[0] * sq_ref[:, 0:1]
    for s in range(1, S):               # S is a static Python int (tiny)
        est = est + coeff_ref[s] * sq_ref[:, s:s + 1]
    ld_out_ref[...] = ld_in_ref[...] + est


# ---------------------------------------------------------------------------
# Tiling helpers
# ---------------------------------------------------------------------------
def _vmem_capacity_bytes():
    """Per-core VMEM capacity; conservative fallback if the query fails."""
    try:
        return int(pltpu.get_tpu_info().vmem_capacity_bytes)
    except Exception:
        return 64 * 1024 * 1024        # v7x per-core size (smallest generation)


def _pick_batch_tile(B, bytes_per_row, budget_bytes):
    """Pick (tb, n_tiles) such that:
       * n_tiles is even (>= 2) so the 'parallel' batch axis splits evenly
         across v7x's two TensorCores (on 1-TC chips the extra grid step costs
         ~0.35 us, negligible);
       * tb is a multiple of 8 (sublane granularity; log-det vectors use the
         sublane axis, so no 128-multiple requirement);
       * the double-buffered working set of one tile fits the VMEM budget.
       The caller zero-pads the batch up to tb * n_tiles."""
    cap_rows = max(8, (budget_bytes // max(bytes_per_row, 1)) // 8 * 8)
    n_tiles = 2
    while -(-B // n_tiles) > cap_rows:   # ceil-div
        n_tiles += 2
    tb = -(-B // n_tiles)
    tb = -(-tb // 8) * 8                 # round up to a multiple of 8
    return tb, n_tiles


# ---------------------------------------------------------------------------
# Wrapper (batch-tiled, auto-pipelined)
# ---------------------------------------------------------------------------
def iresblock_forward(x, log_df_dz, sq_norms, coeff_sums):
    """Pallas forward for InvertibleResBlockBase (g_fn == empty Sequential).

    x:           (B, D)  float32 input.
    log_df_dz:   (B,)    float32 incoming log-det.
    sq_norms:    (B, S)  float32 ||v_{s,b}||^2 of the Gaussian probes
                         (probes sampled host-side, exactly as the PyTorch
                          code samples them inside log_df_dz_unbias).
    coeff_sums:  (S,)    float32 per-sample power-series coefficient sums with
                         the 1/n_samples factor already folded in.
    returns (z, log_df_dz_out) with shapes (B, D), (B,).
    """
    B, D = x.shape
    S = sq_norms.shape[1]

    vmem_cap = _vmem_capacity_bytes()
    vmem_limit = (vmem_cap * 3) // 4          # ~96 MiB on 128 MiB parts, ~48 on v7x
    tile_budget = (vmem_cap * 3) // 8         # double-buffered working-set budget

    itemsize = jnp.dtype(x.dtype).itemsize
    # x tile + z tile + sq tile + ld in/out, x2 for double buffering.
    bytes_per_row = 2 * (2 * itemsize * D + 4 * S + 8)
    tb, n_tiles = _pick_batch_tile(B, bytes_per_row, tile_budget)
    b_pad = tb * n_tiles

    x_p = x
    sq_p = jnp.asarray(sq_norms, jnp.float32)
    ld_p = log_df_dz.astype(jnp.float32).reshape(B, 1)
    if b_pad != B:
        pad = b_pad - B
        x_p = jnp.pad(x_p, ((0, pad), (0, 0)))
        sq_p = jnp.pad(sq_p, ((0, pad), (0, 0)))
        ld_p = jnp.pad(ld_p, ((0, pad), (0, 0)))
    coeff = jnp.asarray(coeff_sums, jnp.float32).reshape(S)

    z, ld_out = pl.pallas_call(
        _iresblock_fwd_kernel,
        out_shape=(jax.ShapeDtypeStruct((b_pad, D), x.dtype),
                   jax.ShapeDtypeStruct((b_pad, 1), jnp.float32)),
        grid_spec=pltpu.PrefetchScalarGridSpec(
            num_scalar_prefetch=0,
            grid=(n_tiles,),
            in_specs=[
                pl.BlockSpec(memory_space=pltpu.MemorySpace.SMEM),   # coeff sums
                pl.BlockSpec((tb, D), lambda i: (i, 0)),             # x tile
                pl.BlockSpec((tb, S), lambda i: (i, 0)),             # ||v||^2 tile
                pl.BlockSpec((tb, 1), lambda i: (i, 0)),             # log_df_dz in
            ],
            out_specs=(
                pl.BlockSpec((tb, D), lambda i: (i, 0)),             # z tile
                pl.BlockSpec((tb, 1), lambda i: (i, 0)),             # log_df_dz out
            ),
        ),
        compiler_params=pltpu.CompilerParams(
            dimension_semantics=("parallel",),    # batch tiles independent
            vmem_limit_bytes=int(vmem_limit)),
    )(coeff, x_p, sq_p, ld_p)

    if b_pad != B:
        z = z[:B]
        ld_out = ld_out[:B]
    return z, ld_out.reshape(B)


# ---------------------------------------------------------------------------
# Host-side replica of the stochastic coefficient schedule of log_df_dz_unbias
# ---------------------------------------------------------------------------
def _unbias_series_coeff(k, p, n_exact):
    """k-th coefficient of the debiased power series."""
    geom_cdf = (1.0 - p) ** max(0, k - n_exact - 1)
    return ((-1.0) ** (k + 1)) / (k * geom_cdf)


def make_unbias_coeff_sums(series_lengths, p, n_exact):
    """Per-sample coefficient sums (series length N_s = n_exact + Geometric(p),
    sampled host-side exactly as log_df_dz_unbias does), with the final
    1/n_samples average folded in.  Shape (n_samples,), float32."""
    n_samples = len(series_lengths)
    sums = np.array(
        [sum(_unbias_series_coeff(k, p, n_exact) for k in range(1, n + 1))
         for n in series_lengths], np.float64)
    return (sums / n_samples).astype(np.float32)


if __name__ == "__main__":
    B, D = 384, 128          # (batch, flattened features) flow input
    N_SAMPLES = 1            # training-mode estimator: log_df_dz_unbias(g, x, 1)
    P_GEOM = 0.5
    N_EXACT = 1

    key = jax.random.PRNGKey(0)
    kx, kld, kv = jax.random.split(key, 3)
    x = jax.random.normal(kx, (B, D), dtype=jnp.float32)
    log_df_dz = jax.random.normal(kld, (B,), dtype=jnp.float32)

    # Deterministic host-side sampling of the stochastic estimator pieces,
    # mirroring the PyTorch code's host-side np.random / torch.randn calls.
    np_rng = np.random.RandomState(0)
    lengths = [int(N_EXACT + np_rng.geometric(P_GEOM)) for _ in range(N_SAMPLES)]
    coeff_sums = jnp.asarray(make_unbias_coeff_sums(lengths, P_GEOM, N_EXACT))

    # Gaussian probes (float32, as in the reference) and their squared norms.
    # Only the O(S*B) squared norms enter the kernel (identity-Jacobian collapse).
    v = jax.random.normal(kv, (N_SAMPLES, B, D), dtype=jnp.float32)
    v_np = np.asarray(v, np.float32)
    sq_norms = jnp.asarray(np.sum(v_np * v_np, axis=-1, dtype=np.float32).T)  # (B, S)

    z, logdet_out = iresblock_forward(x, log_df_dz, sq_norms, coeff_sums)
    jax.block_until_ready((z, logdet_out))

    # Pure-host reference replicating the ORIGINAL (uncollapsed) series:
    # g = identity => every autograd VJP returns the probe itself.
    xn = np.asarray(x, np.float64)
    vn = np.asarray(v_np, np.float64)
    z_ref = xn + xn
    res_ref = np.zeros((B,), np.float64)
    for s, n_k in enumerate(lengths):
        w = vn[s]
        acc = np.zeros((B,), np.float64)
        for k in range(1, n_k + 1):
            w = w                                    # identity-Jacobian VJP
            acc += _unbias_series_coeff(k, P_GEOM, N_EXACT) * np.sum(w * vn[s], axis=1)
        res_ref += acc
    logdet_ref = np.asarray(log_df_dz, np.float64) + res_ref / N_SAMPLES

    np.testing.assert_allclose(np.asarray(z), z_ref, rtol=1e-6, atol=1e-6)
    np.testing.assert_allclose(np.asarray(logdet_out), logdet_ref,
                               rtol=1e-4, atol=1e-3)
    print("KERNEL_OK")
</pallas_src>

<mosaic_0001>
module attributes {stable_mosaic.version = 11 : i64} {
  func.func @_iresblock_fwd_kernel(%arg0: i32, %arg1: memref<1xf32, #tpu.memory_space<smem>>, %arg2: memref<192x128xf32, #tpu.memory_space<vmem>>, %arg3: memref<192x1xf32, #tpu.memory_space<vmem>>, %arg4: memref<192x1xf32, #tpu.memory_space<vmem>>, %arg5: memref<192x128xf32, #tpu.memory_space<vmem>>, %arg6: memref<192x1xf32, #tpu.memory_space<vmem>>) attributes {dimension_semantics = [#tpu.dimension_semantics<parallel>], iteration_bounds = array<i64: 2>, scalar_prefetch = 0 : i64, scratch_operands = 0 : i64, tpu.core_type = #tpu.core_type<tc>, window_params = [{transform_indices = @transform_0, window_bounds = array<i64: 1>}, {transform_indices = @transform_1, window_bounds = array<i64: 192, 128>}, {transform_indices = @transform_2, window_bounds = array<i64: 192, 1>}, {transform_indices = @transform_3, window_bounds = array<i64: 192, 1>}, {transform_indices = @transform_4, window_bounds = array<i64: 192, 128>}, {transform_indices = @transform_5, window_bounds = array<i64: 192, 1>}]} {
    %c0 = arith.constant 0 : index
    %c0_0 = arith.constant 0 : index
    %0 = vector.load %arg2[%c0, %c0_0] : memref<192x128xf32, #tpu.memory_space<vmem>>, vector<192x128xf32>
    %1 = arith.addf %0, %0 : vector<192x128xf32>
    %c0_1 = arith.constant 0 : index
    %c0_2 = arith.constant 0 : index
    %2 = vector.load %arg5[%c0_1, %c0_2] : memref<192x128xf32, #tpu.memory_space<vmem>>, vector<192x128xf32>
    tpu.vector_store %arg5[%c0_1, %c0_2], %1 {strides = array<i32>} : memref<192x128xf32, #tpu.memory_space<vmem>>, vector<192x128xf32>,
    %c0_3 = arith.constant 0 : index
    %3 = memref.load %arg1[%c0_3] : memref<1xf32, #tpu.memory_space<smem>>
    %c0_4 = arith.constant 0 : index
    %c0_5 = arith.constant 0 : index
    %4 = vector.load %arg3[%c0_4, %c0_5] : memref<192x1xf32, #tpu.memory_space<vmem>>, vector<192x1xf32>
    %5 = vector.broadcast %3 : f32 to vector<192x1xf32>
    %6 = arith.mulf %5, %4 : vector<192x1xf32>
    %c0_6 = arith.constant 0 : index
    %c0_7 = arith.constant 0 : index
    %7 = vector.load %arg4[%c0_6, %c0_7] : memref<192x1xf32, #tpu.memory_space<vmem>>, vector<192x1xf32>
    %8 = arith.addf %7, %6 : vector<192x1xf32>
    %c0_8 = arith.constant 0 : index
    %c0_9 = arith.constant 0 : index
    %9 = vector.load %arg6[%c0_8, %c0_9] : memref<192x1xf32, #tpu.memory_space<vmem>>, vector<192x1xf32>
    tpu.vector_store %arg6[%c0_8, %c0_9], %8 {strides = array<i32>} : memref<192x1xf32, #tpu.memory_space<vmem>>, vector<192x1xf32>,
    return
  }
  func.func @transform_0(%arg0: i32) -> i32 {
    %c0_i32 = arith.constant 0 : i32
    %c0_i32_0 = arith.constant 0 : i32
    return %c0_i32 : i32
  }
  func.func @transform_1(%arg0: i32) -> (i32, i32) {
    %c0_i32 = arith.constant 0 : i32
    %c0_i32_0 = arith.constant 0 : i32
    return %arg0, %c0_i32 : i32, i32
  }
  func.func @transform_2(%arg0: i32) -> (i32, i32) {
    %c0_i32 = arith.constant 0 : i32
    %c0_i32_0 = arith.constant 0 : i32
    return %arg0, %c0_i32 : i32, i32
  }
  func.func @transform_3(%arg0: i32) -> (i32, i32) {
    %c0_i32 = arith.constant 0 : i32
    %c0_i32_0 = arith.constant 0 : i32
    return %arg0, %c0_i32 : i32, i32
  }
  func.func @transform_4(%arg0: i32) -> (i32, i32) {
    %c0_i32 = arith.constant 0 : i32
    %c0_i32_0 = arith.constant 0 : i32
    return %arg0, %c0_i32 : i32, i32
  }
  func.func @transform_5(%arg0: i32) -> (i32, i32) {
    %c0_i32 = arith.constant 0 : i32
    %c0_i32_0 = arith.constant 0 : i32
    return %arg0, %c0_i32 : i32, i32
  }
}

</mosaic_0001>

<llo_original>
// kernel: tpu_custom_call.1
$region0: #{tpu_custom_call.1}
  #allocation0 [shape = 'u32[]', space=smem, size = 0x4, offset = 0x4, fixed_abs, tag = 'smem constant byte address 0x4 - core index']
  #allocation1 [shape = 'u32[144,128]{1,0:T(1,128)}', space=vmem, size = 0x12000, scoped, tag = 'internal scratch']
  #allocation2 [shape = 'f32[1]{0:T(128)S(6)}', space=smem, size = 0x200, scoped, tag = 'scoped memory for tpu_custom_call.1']
  %s0 = inlined_call_operand.<no memory space> [shape: f32[1], index: 0, kind: input, shape index: {}]
  %s1 = inlined_call_operand.vmem [shape: f32[384,128], index: 1, kind: input, shape index: {}]
  %s2 = inlined_call_operand.vmem [shape: f32[384,1], index: 2, kind: input, shape index: {}]
  %s3 = inlined_call_operand.vmem [shape: f32[384,1], index: 3, kind: input, shape index: {}]
  %s4 = inlined_call_operand.hbm [shape: f32[384,128], index: 4, kind: output, shape index: {0}]
  %s5 = inlined_call_operand.vmem [shape: f32[384,1], index: 5, kind: output, shape index: {1}]
  %6 = xla_tuple %s4, %s5
  %s7 = sld [smem:[#allocation0]]
  $region57: #{tpu_custom_call.1} parent=0
    _
  %s9 = ssub.s32 1, %s7
  %s10 = scalar_select 0, %s9, %s7
  %11 = sst [smem:[#allocation2]] %s0
  $region1: #{tpu_custom_call.1} parent=0
    #allocation3 [shape = 'u8[196608]{0}', space=vmem, size = 0x30000, scoped, tag = 'output window, operand 0']
    #allocation4 [shape = 's32[2]{0}', space=sflag, size = 0x8, scoped, tag = 'scoped memory for tpu_custom_call.1']
    %12 = vsyncpa [#allocation4], 0
    %s13 = scalar_lea.sflag [#allocation4], 1
    %14 = vsyncpa %s13, 0
    loop: start=0, step=1, limit=4
    $region2: #{tpu_custom_call.1} parent=1 // loop_pre_header
      _
    $region3: #{tpu_custom_call.1} parent=1 // loop_header
      %s16 = sphi 0, %s20
      %p17 = scmp.ge.s32.totalorder %s16, 4
      %s24 = sphi 0, %s24
      %s26 = sphi 0, %s24
      %s27 = sphi 0, %s26
      %s41 = sphi 0, %s27
      %s47 = sphi 0, %s49
      %s50 = sphi 0, %s47
      %s51 = sphi 0, %s50
      %s67 = sphi 0, %s51
      %s73 = sphi 0, %s75
      %s76 = sphi 0, %s73
      %s77 = sphi 0, %s76
      %s93 = sphi 0, %s77
      %s99 = sphi 0, %s101
      %s102 = sphi 0, %s99
      %s103 = sphi 0, %s102
      %s119 = sphi 0, %s103
      %s125 = sphi 0, %s127
      %s128 = sphi 0, %s125
      %s129 = sphi 0, %s128
      %s145 = sphi 0, %s129
      %s151 = sphi 0, %s153
      %s154 = sphi 0, %s151
      %s155 = sphi 0, %s154
      %s171 = sphi 0, %s155
    $region4: #{tpu_custom_call.1} parent=1 // loop_header_branch
      %19 = sbr.rel (%p17) target = $region8
    $region5: #{tpu_custom_call.1} parent=1 // loop_body
      %s21 = ssub.s32 %s16, 1
      %s22 = ssub.s32 %s16, 2
      %s23 = sadd.s32 %s16, 1
      %s25 = sadd.s32 %s24, 1
      %p28 = scmp.eq.s32.totalorder %s16, 1
      %p29 = scmp.ne.s32.totalorder %s24, %s26
      %p30 = scmp.eq.s32.totalorder %s16, 0
      %p31 = por %p29, %p30
      %p32 = scmp.ne.s32.totalorder %s24, %s26
      %p33 = scmp.eq.s32.totalorder %s21, 1
      %p34 = por %p32, %p33
      %p35 = scmp.ne.s32.totalorder %s26, %s27
      %p36 = scmp.eq.s32.totalorder %s21, 0
      %p37 = por %p35, %p36
      %p38 = scmp.ne.s32.totalorder %s26, %s27
      %p39 = scmp.eq.s32.totalorder %s22, 1
      %p40 = por %p38, %p39
      %p42 = scmp.ne.s32.totalorder %s27, %s41
      %p43 = scmp.eq.s32.totalorder %s22, 0
      %p44 = por %p42, %p43
      %s45 = ssub.s32 %s16, %s23
      %p46 = scmp.eq.s32.totalorder %s45, 0
      %s48 = sadd.s32 %s47, 1
      %s49 = scalar_select %p46, %s47, %s48
      %p52 = pneg %p46
      %p53 = scmp.eq.s32.totalorder %s16, 1
      %p54 = por %p52, %p53
      %p55 = scmp.ne.s32.totalorder %s47, %s50
      %p56 = scmp.eq.s32.totalorder %s16, 0
      %p57 = por %p55, %p56
      %p58 = scmp.ne.s32.totalorder %s47, %s50
      %p59 = scmp.eq.s32.totalorder %s21, 1
      %p60 = por %p58, %p59
      %p61 = scmp.ne.s32.totalorder %s50, %s51
      %p62 = scmp.eq.s32.totalorder %s21, 0
      %p63 = por %p61, %p62
      %p64 = scmp.ne.s32.totalorder %s50, %s51
      %p65 = scmp.eq.s32.totalorder %s22, 1
      %p66 = por %p64, %p65
      %p68 = scmp.ne.s32.totalorder %s51, %s67
      %p69 = scmp.eq.s32.totalorder %s22, 0
      %p70 = por %p68, %p69
      %s71 = ssub.s32 %s16, %s23
      %p72 = scmp.eq.s32.totalorder %s71, 0
      %s74 = sadd.s32 %s73, 1
      %s75 = scalar_select %p72, %s73, %s74
      %p78 = pneg %p72
      %p79 = scmp.eq.s32.totalorder %s16, 1
      %p80 = por %p78, %p79
      %p81 = scmp.ne.s32.totalorder %s73, %s76
      %p82 = scmp.eq.s32.totalorder %s16, 0
      %p83 = por %p81, %p82
      %p84 = scmp.ne.s32.totalorder %s73, %s76
      %p85 = scmp.eq.s32.totalorder %s21, 1
      %p86 = por %p84, %p85
      %p87 = scmp.ne.s32.totalorder %s76, %s77
      %p88 = scmp.eq.s32.totalorder %s21, 0
      %p89 = por %p87, %p88
      %p90 = scmp.ne.s32.totalorder %s76, %s77
      %p91 = scmp.eq.s32.totalorder %s22, 1
      %p92 = por %p90, %p91
      %p94 = scmp.ne.s32.totalorder %s77, %s93
      %p95 = scmp.eq.s32.totalorder %s22, 0
      %p96 = por %p94, %p95
      %s97 = ssub.s32 %s16, %s23
      %p98 = scmp.eq.s32.totalorder %s97, 0
      %s100 = sadd.s32 %s99, 1
      %s101 = scalar_select %p98, %s99, %s100
      %p104 = pneg %p98
      %p105 = scmp.eq.s32.totalorder %s16, 1
      %p106 = por %p104, %p105
      %p107 = scmp.ne.s32.totalorder %s99, %s102
      %p108 = scmp.eq.s32.totalorder %s16, 0
      %p109 = por %p107, %p108
      %p110 = scmp.ne.s32.totalorder %s99, %s102
      %p111 = scmp.eq.s32.totalorder %s21, 1
      %p112 = por %p110, %p111
      %p113 = scmp.ne.s32.totalorder %s102, %s103
      %p114 = scmp.eq.s32.totalorder %s21, 0
      %p115 = por %p113, %p114
      %p116 = scmp.ne.s32.totalorder %s102, %s103
      %p117 = scmp.eq.s32.totalorder %s22, 1
      %p118 = por %p116, %p117
      %p120 = scmp.ne.s32.totalorder %s103, %s119
      %p121 = scmp.eq.s32.totalorder %s22, 0
      %p122 = por %p120, %p121
      %s123 = ssub.s32 %s16, %s23
      %p124 = scmp.eq.s32.totalorder %s123, 0
      %s126 = sadd.s32 %s125, 1
      %s127 = scalar_select %p124, %s125, %s126
      %p130 = pneg %p124
      %p131 = scmp.eq.s32.totalorder %s16, 1
      %p132 = por %p130, %p131
      %p133 = scmp.ne.s32.totalorder %s125, %s128
      %p134 = scmp.eq.s32.totalorder %s16, 0
      %p135 = por %p133, %p134
      %p136 = scmp.ne.s32.totalorder %s125, %s128
      %p137 = scmp.eq.s32.totalorder %s21, 1
      %p138 = por %p136, %p137
      %p139 = scmp.ne.s32.totalorder %s128, %s129
      %p140 = scmp.eq.s32.totalorder %s21, 0
      %p141 = por %p139, %p140
      %p142 = scmp.ne.s32.totalorder %s128, %s129
      %p143 = scmp.eq.s32.totalorder %s22, 1
      %p144 = por %p142, %p143
      %p146 = scmp.ne.s32.totalorder %s129, %s145
      %p147 = scmp.eq.s32.totalorder %s22, 0
      %p148 = por %p146, %p147
      %s149 = ssub.s32 %s16, %s23
      %p150 = scmp.eq.s32.totalorder %s149, 0
      %s152 = sadd.s32 %s151, 1
      %s153 = scalar_select %p150, %s151, %s152
      %p156 = pneg %p150
      %p157 = scmp.eq.s32.totalorder %s16, 1
      %p158 = por %p156, %p157
      %p159 = scmp.ne.s32.totalorder %s151, %s154
      %p160 = scmp.eq.s32.totalorder %s16, 0
      %p161 = por %p159, %p160
      %p162 = scmp.ne.s32.totalorder %s151, %s154
      %p163 = scmp.eq.s32.totalorder %s21, 1
      %p164 = por %p162, %p163
      %p165 = scmp.ne.s32.totalorder %s154, %s155
      %p166 = scmp.eq.s32.totalorder %s21, 0
      %p167 = por %p165, %p166
      %p168 = scmp.ne.s32.totalorder %s154, %s155
      %p169 = scmp.eq.s32.totalorder %s22, 1
      %p170 = por %p168, %p169
      %p172 = scmp.ne.s32.totalorder %s155, %s171
      %p173 = scmp.eq.s32.totalorder %s22, 0
      %p174 = por %p172, %p173
      %p175 = scmp.le.s32.totalorder 1, %s16
      %p176 = scmp.lt.s32.totalorder %s16, 3
      %p177 = pnand %p175, %p176
      %p178 = pneg %p177
      // Predicated region
      $region9: #{tpu_custom_call.1} parent=5 // pred_check
        _
      $region10: #{tpu_custom_call.1} parent=5 // pred_check_branch
        %180 = sbr.rel (%p177) target = $region12
      $region11: #{tpu_custom_call.1} parent=5 // pred_region
        %s181 = ssub.s32 %s16, 1
        // Predicated region
        $region13: #{tpu_custom_call.1} parent=11 // pred_check
          %p182 = pneg %p37
        $region14: #{tpu_custom_call.1} parent=11 // pred_check_branch
          %184 = sbr.rel (%p182) target = $region16
        $region15: #{tpu_custom_call.1} parent=11 // pred_region
          _
        $region16: #{tpu_custom_call.1} parent=11 // pred_fallthru
          _
      $region12: #{tpu_custom_call.1} parent=5 // pred_fallthru
        _
      %p185 = scmp.lt.s32.totalorder %s16, 2
      // Predicated region
      $region17: #{tpu_custom_call.1} parent=5 // pred_check
        %p186 = pneg %p185
      $region18: #{tpu_custom_call.1} parent=5 // pred_check_branch
        %188 = sbr.rel (%p186) target = $region20
      $region19: #{tpu_custom_call.1} parent=5 // pred_region
        // Predicated region
        $region21: #{tpu_custom_call.1} parent=19 // pred_check
          %p189 = pneg %p57
        $region22: #{tpu_custom_call.1} parent=19 // pred_check_branch
          %191 = sbr.rel (%p189) target = $region24
        $region23: #{tpu_custom_call.1} parent=19 // pred_region
          %s192 = smul.u32 24, %s16
          %p193 = scmp.lt.s32.totalorder %s192, 47
          %s194 = scalar_select %p193, %s192, 47
          %s195 = smul.addr %s194, 8
          %s196 = scalar_lea.vmem %s1, %s195
          %s197 = smul.u32 24, %s16
        $region24: #{tpu_custom_call.1} parent=19 // pred_fallthru
          _
        // Predicated region
        $region25: #{tpu_custom_call.1} parent=19 // pred_check
          %p198 = pneg %p83
        $region26: #{tpu_custom_call.1} parent=19 // pred_check_branch
          %200 = sbr.rel (%p198) target = $region28
        $region27: #{tpu_custom_call.1} parent=19 // pred_region
          %s201 = smul.u32 24, %s16
          %p202 = scmp.lt.s32.totalorder %s201, 47
          %s203 = scalar_select %p202, %s201, 47
          %s204 = smul.addr %s203, 8
          %s205 = scalar_lea.vmem %s2, %s204
          %s206 = smul.u32 24, %s16
        $region28: #{tpu_custom_call.1} parent=19 // pred_fallthru
          _
        // Predicated region
        $region29: #{tpu_custom_call.1} parent=19 // pred_check
          %p207 = pneg %p109
        $region30: #{tpu_custom_call.1} parent=19 // pred_check_branch
          %209 = sbr.rel (%p207) target = $region32
        $region31: #{tpu_custom_call.1} parent=19 // pred_region
          %s210 = smul.u32 24, %s16
          %p211 = scmp.lt.s32.totalorder %s210, 47
          %s212 = scalar_select %p211, %s210, 47
          %s213 = smul.addr %s212, 8
          %s214 = scalar_lea.vmem %s3, %s213
          %s215 = smul.u32 24, %s16
        $region32: #{tpu_custom_call.1} parent=19 // pred_fallthru
          _
      $region20: #{tpu_custom_call.1} parent=5 // pred_fallthru
        _
      %p216 = scmp.le.s32.totalorder 1, %s16
      %p217 = scmp.lt.s32.totalorder %s16, 3
      %p218 = pnand %p216, %p217
      %p219 = pneg %p218
      // Predicated region
      $region33: #{tpu_custom_call.1} parent=5 // pred_check
        _
      $region34: #{tpu_custom_call.1} parent=5 // pred_check_branch
        %221 = sbr.rel (%p218) target = $region36
      $region35: #{tpu_custom_call.1} parent=5 // pred_region
        %s222 = ssub.s32 %s16, 1
        %p223 = pneg %p37
        %p224 = pneg %p34
        %s225 = smul.u32 24, %s21
        %p226 = scmp.lt.s32.totalorder %s225, 47
        %s227 = scalar_select %p226, %s225, 47
        %s228 = smul.addr %s227, 8
        %s229 = scalar_lea.vmem %s1, %s228
        %p230 = pneg %p63
        %p231 = pneg %p60
        %s232 = smul.u32 24, %s21
        %p233 = scmp.lt.s32.totalorder %s232, 47
        %s234 = scalar_select %p233, %s232, 47
        %s235 = smul.addr %s234, 8
        %s236 = scalar_lea.vmem %s2, %s235
        %p237 = pneg %p89
        %p238 = pneg %p86
        %s239 = smul.u32 24, %s21
        %p240 = scmp.lt.s32.totalorder %s239, 47
        %s241 = scalar_select %p240, %s239, 47
        %s242 = smul.addr %s241, 8
        %s243 = scalar_lea.vmem %s3, %s242
        %p244 = pneg %p115
        %p245 = pneg %p112
        %p246 = pneg %p141
        %p247 = pneg %p138
        %s248 = sand.u32 %s128, 1
        %s249 = scalar_lea.sflag [#allocation4], %s248
        %s250 = sand.u32 %s128, 1
        %s251 = smul.addr %s250, 192
        %s252 = scalar_lea.vmem [#allocation3], %s251
        %p253 = pneg %p167
        %p254 = pneg %p164
        %s255 = smul.u32 24, %s21
        %p256 = scmp.lt.s32.totalorder %s255, 47
        %s257 = scalar_select %p256, %s255, 47
        %s258 = smul.addr %s257, 8
        %s259 = scalar_lea.vmem %s5, %s258
        %s260 = smul.u32 24, %s21
        %p261 = scmp.lt.s32.totalorder %s260, 47
        %s262 = scalar_select %p261, %s260, 47
        %s263 = smul.addr %s262, 8
        %s264 = scalar_lea.vmem %s1, %s263
        %s265 = smul.u32 24, %s21
        %s266 = smul.u32 24, %s21
        %p267 = scmp.lt.s32.totalorder %s266, 47
        %s268 = scalar_select %p267, %s266, 47
        %s269 = smul.addr %s268, 8
        %s270 = scalar_lea.vmem %s2, %s269
        %s271 = smul.u32 24, %s21
        %s272 = smul.u32 24, %s21
        %p273 = scmp.lt.s32.totalorder %s272, 47
        %s274 = scalar_select %p273, %s272, 47
        %s275 = smul.addr %s274, 8
        %s276 = scalar_lea.vmem %s3, %s275
        %s277 = smul.u32 24, %s21
        %s278 = smul.u32 24, %s21
        %s279 = smul.u32 24, %s21
        %p280 = scmp.lt.s32.totalorder %s279, 47
        %s281 = scalar_select %p280, %s279, 47
        %s282 = smul.addr %s281, 8
        %s283 = scalar_lea.vmem %s5, %s282
        %s284 = smul.u32 24, %s21
        %v285 = vld [vmem:[%s264] sm:$0xff]
        %v286 = vld [vmem:[%s264 + $0x8] sm:$0xff]
        %v287 = vld [vmem:[%s264 + $0x10] sm:$0xff]
        %v288 = vld [vmem:[%s264 + $0x18] sm:$0xff]
        %v289 = vld [vmem:[%s264 + $0x20] sm:$0xff]
        %v290 = vld [vmem:[%s264 + $0x28] sm:$0xff]
        %v291 = vld [vmem:[%s264 + $0x30] sm:$0xff]
        %v292 = vld [vmem:[%s264 + $0x38] sm:$0xff]
        %v293 = vld [vmem:[%s264 + $0x40] sm:$0xff]
        %v294 = vld [vmem:[%s264 + $0x48] sm:$0xff]
        %v295 = vld [vmem:[%s264 + $0x50] sm:$0xff]
        %v296 = vld [vmem:[%s264 + $0x58] sm:$0xff]
        %v297 = vld [vmem:[%s264 + $0x60] sm:$0xff]
        %v298 = vld [vmem:[%s264 + $0x68] sm:$0xff]
        %v299 = vld [vmem:[%s264 + $0x70] sm:$0xff]
        %v300 = vld [vmem:[%s264 + $0x78] sm:$0xff]
        %v301 = vld [vmem:[%s264 + $0x80] sm:$0xff]
        %v302 = vld [vmem:[%s264 + $0x88] sm:$0xff]
        %v303 = vld [vmem:[%s264 + $0x90] sm:$0xff]
        %v304 = vld [vmem:[%s264 + $0x98] sm:$0xff]
        %v305 = vld [vmem:[%s264 + $0xa0] sm:$0xff]
        %v306 = vld [vmem:[%s264 + $0xa8] sm:$0xff]
        %v307 = vld [vmem:[%s264 + $0xb0] sm:$0xff]
        %v308 = vld [vmem:[%s264 + $0xb8] sm:$0xff]
        %v309 = vadd.f32 %v285, %v285
        %v310 = vadd.f32 %v286, %v286
        %v311 = vadd.f32 %v287, %v287
        %v312 = vadd.f32 %v288, %v288
        %v313 = vadd.f32 %v289, %v289
        %v314 = vadd.f32 %v290, %v290
        %v315 = vadd.f32 %v291, %v291
        %v316 = vadd.f32 %v292, %v292
        %v317 = vadd.f32 %v293, %v293
        %v318 = vadd.f32 %v294, %v294
        %v319 = vadd.f32 %v295, %v295
        %v320 = vadd.f32 %v296, %v296
        %v321 = vadd.f32 %v297, %v297
        %v322 = vadd.f32 %v298, %v298
        %v323 = vadd.f32 %v299, %v299
        %v324 = vadd.f32 %v300, %v300
        %v325 = vadd.f32 %v301, %v301
        %v326 = vadd.f32 %v302, %v302
        %v327 = vadd.f32 %v303, %v303
        %v328 = vadd.f32 %v304, %v304
        %v329 = vadd.f32 %v305, %v305
        %v330 = vadd.f32 %v306, %v306
        %v331 = vadd.f32 %v307, %v307
        %v332 = vadd.f32 %v308, %v308
        %333 = vst [vmem:[%s252] sm:$0xff] %v309
        %334 = vst [vmem:[%s252 + $0x8] sm:$0xff] %v310
        %335 = vst [vmem:[%s252 + $0x10] sm:$0xff] %v311
        %336 = vst [vmem:[%s252 + $0x18] sm:$0xff] %v312
        %337 = vst [vmem:[%s252 + $0x20] sm:$0xff] %v313
        %338 = vst [vmem:[%s252 + $0x28] sm:$0xff] %v314
        %339 = vst [vmem:[%s252 + $0x30] sm:$0xff] %v315
        %340 = vst [vmem:[%s252 + $0x38] sm:$0xff] %v316
        %341 = vst [vmem:[%s252 + $0x40] sm:$0xff] %v317
        %342 = vst [vmem:[%s252 + $0x48] sm:$0xff] %v318
        %343 = vst [vmem:[%s252 + $0x50] sm:$0xff] %v319
        %344 = vst [vmem:[%s252 + $0x58] sm:$0xff] %v320
        %345 = vst [vmem:[%s252 + $0x60] sm:$0xff] %v321
        %346 = vst [vmem:[%s252 + $0x68] sm:$0xff] %v322
        %347 = vst [vmem:[%s252 + $0x70] sm:$0xff] %v323
        %348 = vst [vmem:[%s252 + $0x78] sm:$0xff] %v324
        %349 = vst [vmem:[%s252 + $0x80] sm:$0xff] %v325
        %350 = vst [vmem:[%s252 + $0x88] sm:$0xff] %v326
        %351 = vst [vmem:[%s252 + $0x90] sm:$0xff] %v327
        %352 = vst [vmem:[%s252 + $0x98] sm:$0xff] %v328
        %353 = vst [vmem:[%s252 + $0xa0] sm:$0xff] %v329
        %354 = vst [vmem:[%s252 + $0xa8] sm:$0xff] %v330
        %355 = vst [vmem:[%s252 + $0xb0] sm:$0xff] %v331
        %356 = vst [vmem:[%s252 + $0xb8] sm:$0xff] %v332
        %s357 = sld [smem:[#allocation2]]
        %v358 = vld [vmem:[%s270] sm:$0xff]
        %v359 = vld [vmem:[%s270 + $0x8] sm:$0xff]
        %v360 = vld [vmem:[%s270 + $0x10] sm:$0xff]
        %v361 = vld [vmem:[%s270 + $0x18] sm:$0xff]
        %v362 = vld [vmem:[%s270 + $0x20] sm:$0xff]
        %v363 = vld [vmem:[%s270 + $0x28] sm:$0xff]
        %v364 = vld [vmem:[%s270 + $0x30] sm:$0xff]
        %v365 = vld [vmem:[%s270 + $0x38] sm:$0xff]
        %v366 = vld [vmem:[%s270 + $0x40] sm:$0xff]
        %v367 = vld [vmem:[%s270 + $0x48] sm:$0xff]
        %v368 = vld [vmem:[%s270 + $0x50] sm:$0xff]
        %v369 = vld [vmem:[%s270 + $0x58] sm:$0xff]
        %v370 = vld [vmem:[%s270 + $0x60] sm:$0xff]
        %v371 = vld [vmem:[%s270 + $0x68] sm:$0xff]
        %v372 = vld [vmem:[%s270 + $0x70] sm:$0xff]
        %v373 = vld [vmem:[%s270 + $0x78] sm:$0xff]
        %v374 = vld [vmem:[%s270 + $0x80] sm:$0xff]
        %v375 = vld [vmem:[%s270 + $0x88] sm:$0xff]
        %v376 = vld [vmem:[%s270 + $0x90] sm:$0xff]
        %v377 = vld [vmem:[%s270 + $0x98] sm:$0xff]
        %v378 = vld [vmem:[%s270 + $0xa0] sm:$0xff]
        %v379 = vld [vmem:[%s270 + $0xa8] sm:$0xff]
        %v380 = vld [vmem:[%s270 + $0xb0] sm:$0xff]
        %v381 = vld [vmem:[%s270 + $0xb8] sm:$0xff]
        %v382 = vstv %s357
        %v383 = vmul.f32 %v382, %v358
        %v384 = vmul.f32 %v382, %v359
        %v385 = vmul.f32 %v382, %v360
        %v386 = vmul.f32 %v382, %v361
        %v387 = vmul.f32 %v382, %v362
        %v388 = vmul.f32 %v382, %v363
        %v389 = vmul.f32 %v382, %v364
        %v390 = vmul.f32 %v382, %v365
        %v391 = vmul.f32 %v382, %v366
        %v392 = vmul.f32 %v382, %v367
        %v393 = vmul.f32 %v382, %v368
        %v394 = vmul.f32 %v382, %v369
        %v395 = vmul.f32 %v382, %v370
        %v396 = vmul.f32 %v382, %v371
        %v397 = vmul.f32 %v382, %v372
        %v398 = vmul.f32 %v382, %v373
        %v399 = vmul.f32 %v382, %v374
        %v400 = vmul.f32 %v382, %v375
        %v401 = vmul.f32 %v382, %v376
        %v402 = vmul.f32 %v382, %v377
        %v403 = vmul.f32 %v382, %v378
        %v404 = vmul.f32 %v382, %v379
        %v405 = vmul.f32 %v382, %v380
        %v406 = vmul.f32 %v382, %v381
        %v407 = vld [vmem:[%s276] sm:$0xff]
        %v408 = vld [vmem:[%s276 + $0x8] sm:$0xff]
        %v409 = vld [vmem:[%s276 + $0x10] sm:$0xff]
        %v410 = vld [vmem:[%s276 + $0x18] sm:$0xff]
        %v411 = vld [vmem:[%s276 + $0x20] sm:$0xff]
        %v412 = vld [vmem:[%s276 + $0x28] sm:$0xff]
        %v413 = vld [vmem:[%s276 + $0x30] sm:$0xff]
        %v414 = vld [vmem:[%s276 + $0x38] sm:$0xff]
        %v415 = vld [vmem:[%s276 + $0x40] sm:$0xff]
        %v416 = vld [vmem:[%s276 + $0x48] sm:$0xff]
        %v417 = vld [vmem:[%s276 + $0x50] sm:$0xff]
        %v418 = vld [vmem:[%s276 + $0x58] sm:$0xff]
        %v419 = vld [vmem:[%s276 + $0x60] sm:$0xff]
        %v420 = vld [vmem:[%s276 + $0x68] sm:$0xff]
        %v421 = vld [vmem:[%s276 + $0x70] sm:$0xff]
        %v422 = vld [vmem:[%s276 + $0x78] sm:$0xff]
        %v423 = vld [vmem:[%s276 + $0x80] sm:$0xff]
        %v424 = vld [vmem:[%s276 + $0x88] sm:$0xff]
        %v425 = vld [vmem:[%s276 + $0x90] sm:$0xff]
        %v426 = vld [vmem:[%s276 + $0x98] sm:$0xff]
        %v427 = vld [vmem:[%s276 + $0xa0] sm:$0xff]
        %v428 = vld [vmem:[%s276 + $0xa8] sm:$0xff]
        %v429 = vld [vmem:[%s276 + $0xb0] sm:$0xff]
        %v430 = vld [vmem:[%s276 + $0xb8] sm:$0xff]
        %v431 = vadd.f32 %v407, %v383
        %v432 = vadd.f32 %v408, %v384
        %v433 = vadd.f32 %v409, %v385
        %v434 = vadd.f32 %v410, %v386
        %v435 = vadd.f32 %v411, %v387
        %v436 = vadd.f32 %v412, %v388
        %v437 = vadd.f32 %v413, %v389
        %v438 = vadd.f32 %v414, %v390
        %v439 = vadd.f32 %v415, %v391
        %v440 = vadd.f32 %v416, %v392
        %v441 = vadd.f32 %v417, %v393
        %v442 = vadd.f32 %v418, %v394
        %v443 = vadd.f32 %v419, %v395
        %v444 = vadd.f32 %v420, %v396
        %v445 = vadd.f32 %v421, %v397
        %v446 = vadd.f32 %v422, %v398
        %v447 = vadd.f32 %v423, %v399
        %v448 = vadd.f32 %v424, %v400
        %v449 = vadd.f32 %v425, %v401
        %v450 = vadd.f32 %v426, %v402
        %v451 = vadd.f32 %v427, %v403
        %v452 = vadd.f32 %v428, %v404
        %v453 = vadd.f32 %v429, %v405
        %v454 = vadd.f32 %v430, %v406
        %vm455 = vcmask 7168
        %456 = vst.msk [vmem:[%s283] sm:$0xff] %vm455, %v431
        %457 = vst.msk [vmem:[%s283 + $0x8] sm:$0xff] %vm455, %v432
        %458 = vst.msk [vmem:[%s283 + $0x10] sm:$0xff] %vm455, %v433
        %459 = vst.msk [vmem:[%s283 + $0x18] sm:$0xff] %vm455, %v434
        %460 = vst.msk [vmem:[%s283 + $0x20] sm:$0xff] %vm455, %v435
        %461 = vst.msk [vmem:[%s283 + $0x28] sm:$0xff] %vm455, %v436
        %462 = vst.msk [vmem:[%s283 + $0x30] sm:$0xff] %vm455, %v437
        %463 = vst.msk [vmem:[%s283 + $0x38] sm:$0xff] %vm455, %v438
        %464 = vst.msk [vmem:[%s283 + $0x40] sm:$0xff] %vm455, %v439
        %465 = vst.msk [vmem:[%s283 + $0x48] sm:$0xff] %vm455, %v440
        %466 = vst.msk [vmem:[%s283 + $0x50] sm:$0xff] %vm455, %v441
        %467 = vst.msk [vmem:[%s283 + $0x58] sm:$0xff] %vm455, %v442
        %468 = vst.msk [vmem:[%s283 + $0x60] sm:$0xff] %vm455, %v443
        %469 = vst.msk [vmem:[%s283 + $0x68] sm:$0xff] %vm455, %v444
        %470 = vst.msk [vmem:[%s283 + $0x70] sm:$0xff] %vm455, %v445
        %471 = vst.msk [vmem:[%s283 + $0x78] sm:$0xff] %vm455, %v446
        %472 = vst.msk [vmem:[%s283 + $0x80] sm:$0xff] %vm455, %v447
        %473 = vst.msk [vmem:[%s283 + $0x88] sm:$0xff] %vm455, %v448
        %474 = vst.msk [vmem:[%s283 + $0x90] sm:$0xff] %vm455, %v449
        %475 = vst.msk [vmem:[%s283 + $0x98] sm:$0xff] %vm455, %v450
        %476 = vst.msk [vmem:[%s283 + $0xa0] sm:$0xff] %vm455, %v451
        %477 = vst.msk [vmem:[%s283 + $0xa8] sm:$0xff] %vm455, %v452
        %478 = vst.msk [vmem:[%s283 + $0xb0] sm:$0xff] %vm455, %v453
        %479 = vst.msk [vmem:[%s283 + $0xb8] sm:$0xff] %vm455, %v454
        %s480 = sand.u32 %s128, 1
        %s481 = scalar_lea.sflag [#allocation4], %s480
        %s482 = sand.u32 %s128, 1
        %s483 = smul.addr %s482, 192
        %s484 = scalar_lea.vmem [#allocation3], %s483
        %s485 = smul.u32 24, %s21
        %p486 = scmp.lt.s32.totalorder %s485, 47
        %s487 = scalar_select %p486, %s485, 47
        %s488 = smul.addr %s487, 8
        %s489 = scalar_lea.vmem %s5, %s488
        // Predicated region
        $region37: #{tpu_custom_call.1} parent=35 // pred_check
          %p490 = pneg %p138
        $region38: #{tpu_custom_call.1} parent=35 // pred_check_branch
          %492 = sbr.rel (%p490) target = $region40
        $region39: #{tpu_custom_call.1} parent=35 // pred_region
          %s493 = smul.u32 24, %s21
          %s495 = ssub.s32 3072, 3072
          %496 = vsyncadd %s481, %s495
          %s497 = smul.addr %s493, 128
          %s498 = scalar_lea.hbm %s4, %s497
          %s499 = sshll.u32 %s484, 4
          %s500 = int_to_ptr.vmem [resolvable:$true] %s499
          %505 = dma.vmem_to_hbm [thread:$0]  %s500, 3072, %s498, %s481, 128, 128, 8
        $region40: #{tpu_custom_call.1} parent=35 // pred_fallthru
          _
        // Predicated region
        $region41: #{tpu_custom_call.1} parent=35 // pred_check
          %p506 = pneg %p164
        $region42: #{tpu_custom_call.1} parent=35 // pred_check_branch
          %508 = sbr.rel (%p506) target = $region44
        $region43: #{tpu_custom_call.1} parent=35 // pred_region
          %s509 = smul.u32 24, %s21
        $region44: #{tpu_custom_call.1} parent=35 // pred_fallthru
          _
      $region36: #{tpu_custom_call.1} parent=5 // pred_fallthru
        _
      %p510 = scmp.le.s32.totalorder 2, %s16
      // Predicated region
      $region45: #{tpu_custom_call.1} parent=5 // pred_check
        %p511 = pneg %p510
      $region46: #{tpu_custom_call.1} parent=5 // pred_check_branch
        %513 = sbr.rel (%p511) target = $region48
      $region47: #{tpu_custom_call.1} parent=5 // pred_region
        %s514 = ssub.s32 %s16, 2
        // Predicated region
        $region49: #{tpu_custom_call.1} parent=47 // pred_check
          %p515 = pneg %p144
        $region50: #{tpu_custom_call.1} parent=47 // pred_check_branch
          %517 = sbr.rel (%p515) target = $region52
        $region51: #{tpu_custom_call.1} parent=47 // pred_region
          %s518 = sand.u32 %s129, 1
          %s519 = scalar_lea.sflag [#allocation4], %s518
          %s520 = sand.u32 %s129, 1
          %s521 = smul.addr %s520, 192
          %s522 = scalar_lea.vmem [#allocation3], %s521
          %523 = dma.done %s519, 3072
        $region52: #{tpu_custom_call.1} parent=47 // pred_fallthru
          _
        // Predicated region
        $region53: #{tpu_custom_call.1} parent=47 // pred_check
          %p524 = pneg %p170
        $region54: #{tpu_custom_call.1} parent=47 // pred_check_branch
          %526 = sbr.rel (%p524) target = $region56
        $region55: #{tpu_custom_call.1} parent=47 // pred_region
          %s527 = smul.u32 24, %s22
          %p528 = scmp.lt.s32.totalorder %s527, 47
          %s529 = scalar_select %p528, %s527, 47
          %s530 = smul.addr %s529, 8
          %s531 = scalar_lea.vmem %s5, %s530
        $region56: #{tpu_custom_call.1} parent=47 // pred_fallthru
          _
      $region48: #{tpu_custom_call.1} parent=5 // pred_fallthru
        _
    $region6: #{tpu_custom_call.1} parent=1 // loop_footer
      %s20 = sadd.s32 1, %s16
    $region7: #{tpu_custom_call.1} parent=1 // loop_footer_branch
      %15 = sbr.rel target = $region3
    $region8: #{tpu_custom_call.1} parent=1 // loop_exit
      _
    %532 = vsyncpa [#allocation4], 1
    %s533 = scalar_lea.sflag [#allocation4], 1
    %534 = vsyncpa %s533, 1

</llo_original>
